<compile_context>
chip_gen: v5e
topology: v5e:2x2
jax: 0.10.0
libtpu: 0.0.40
codegen_flags: <defaults>
</compile_context>

<pallas_src>
import functools

import jax
import jax.numpy as jnp
from jax.experimental import pallas as pl
from jax.experimental.pallas import tpu as pltpu


_NEG_SLOPE = 0.2
_MAX_BLOCK_N = 4096                       # lane-dense cap (review: sweep 1k-4k)
_VMEM_BLOCK_BUDGET = 8 * 1024 * 1024      # per point-block working-set budget
_VMEM_LIMIT_BYTES = 32 * 1024 * 1024      # safe on v5e/v6e (128 MiB) and v7x (64 MiB)


def _leaky_relu(h):
    # LeakyReLU(0.2) == max(h, 0.2*h) for slope < 1 (mul+max: 2 VALU ops).
    return jnp.maximum(h, jnp.float32(_NEG_SLOPE) * h)


def _make_pointwise_mlp_kernel(num_layers, compute_dtype):
    """kernel(x_ref, w_0, ..., w_{L-1}, o_ref)

    x_ref : (C_in, block_n)  VMEM tile (batch dim squeezed by BlockSpec)
    w_i   : (out_i, in_i)    full weight (already compute_dtype), VMEM resident
    o_ref : (C_out, block_n)

    h <- leaky_relu_0.2(W_i @ h) for i < L-1, h <- W_{L-1} @ h for the last
    layer, fully fused; intermediates never leave VMEM/vregs.
    """
    def kernel(x_ref, *refs):
        w_refs, o_ref = refs[:num_layers], refs[num_layers]
        h = x_ref[...]                                            # (C_in, block_n)
        for i in range(num_layers):
            # bf16 x bf16 -> f32 accumulate on the MXU (single-pass pushes).
            h = jnp.dot(w_refs[i][...], h.astype(compute_dtype),
                        preferred_element_type=jnp.float32)       # (out_i, block_n)
            if i < num_layers - 1:
                h = _leaky_relu(h)
        o_ref[...] = h.astype(o_ref.dtype)
    return kernel


def _choose_block_n(N, c_in, out_dim, max_width, in_bytes, out_bytes):
    """Lane-dense, VMEM-budgeted point block."""
    if N <= 128:
        # Full-axis block (allowed: block dim == full array dim).
        return N
    # Per-point VMEM cost: double-buffered x/out blocks + largest live f32
    # intermediate (weights are tiny and independent of block_n here).
    per_point = 2 * c_in * in_bytes + 2 * out_dim * out_bytes + 2 * max_width * 4
    cap = max(128, (_VMEM_BLOCK_BUDGET // per_point) // 128 * 128)
    return min(cap, _MAX_BLOCK_N, (N // 128) * 128)


def pointwise_mlp(x, weights, compute_dtype=jnp.bfloat16):
    """x: (B, C_in, N) (PyTorch Conv1d NCL layout).
       weights[i]: (out_i, in_i) == Conv1d(k=1, bias=False).weight[:, :, 0].
       Returns (B, output_dim, N) in x.dtype."""
    B, c_in, N = x.shape
    assert weights[0].shape[1] == c_in
    out_dim = weights[-1].shape[0]
    max_width = max(w.shape[0] for w in weights)
    num_layers = len(weights)

    # Cast weights once in the wrapper (halves weight bytes, bf16 MXU inputs).
    w_cast = [w.astype(compute_dtype) for w in weights]

    block_n = _choose_block_n(N, c_in, out_dim, max_width,
                              x.dtype.itemsize, x.dtype.itemsize)
    n_blocks = pl.cdiv(N, block_n)

    # Point-block axis first so it is what megacore shards across TCs (v7x).
    grid = (n_blocks, B)

    x_spec = pl.BlockSpec((pl.Squeezed(), c_in, block_n), lambda n, b: (b, 0, n))
    o_spec = pl.BlockSpec((pl.Squeezed(), out_dim, block_n), lambda n, b: (b, 0, n))
    # Weights: full arrays, same block every step -> stay resident in VMEM.
    # TODO(synk): for large hidden widths, switch these to un-blocked VMEM specs
    # (no double-buffering) and charge them against v7x's 64 MiB budget.
    w_specs = [pl.BlockSpec(tuple(w.shape), lambda n, b: (0, 0)) for w in w_cast]

    return pl.pallas_call(
        _make_pointwise_mlp_kernel(num_layers, compute_dtype),
        out_shape=jax.ShapeDtypeStruct((B, out_dim, N), x.dtype),
        grid_spec=pltpu.PrefetchScalarGridSpec(
            num_scalar_prefetch=0,
            grid=grid,
            in_specs=[x_spec] + w_specs,
            out_specs=o_spec,
        ),
        compiler_params=pltpu.CompilerParams(
            dimension_semantics=("parallel", "parallel"),
            vmem_limit_bytes=_VMEM_LIMIT_BYTES),
    )(x, *w_cast)


# ----------------------------------------------------------------------------- #
# Deterministic synthetic parameters + pure-JAX references
# ----------------------------------------------------------------------------- #
def init_params(key, input_dim, l_hidden, output_dim):
    dims = [input_dim] + list(l_hidden) + [output_dim]
    keys = jax.random.split(key, len(dims) - 1)
    weights = []
    for i, k in enumerate(keys):
        scale = 1.0 / jnp.sqrt(jnp.float32(dims[i]))
        weights.append(
            jax.random.normal(k, (dims[i + 1], dims[i]), jnp.float32) * scale)
    return weights


def _reference(x, weights, compute_dtype=None):
    """compute_dtype=None: true f32 module semantics.
       compute_dtype=bf16: emulates bf16 MXU inputs with f32 accumulation."""
    h = x.astype(jnp.float32)
    for i, w in enumerate(weights):
        if compute_dtype is not None:
            w_c = w.astype(compute_dtype).astype(jnp.float32)
            h_c = h.astype(compute_dtype).astype(jnp.float32)
        else:
            w_c, h_c = w, h
        h = jnp.einsum("oc,bcn->bon", w_c, h_c,
                       precision=jax.lax.Precision.HIGHEST)
        if i < len(weights) - 1:
            h = jnp.maximum(h, jnp.float32(_NEG_SLOPE) * h)
    return h


# ----------------------------------------------------------------------------- #
# Main
# ----------------------------------------------------------------------------- #
if __name__ == "__main__":
    # PointwiseMLP(input_dim=6, l_hidden=[16, 32], output_dim=16) on (B, C, N)
    B, input_dim, N = 2, 6, 16
    l_hidden = [16, 32]
    output_dim = 16

    root = jax.random.PRNGKey(0)
    k_w, k_x, k_x2 = jax.random.split(root, 3)
    weights = init_params(k_w, input_dim, l_hidden, output_dim)
    x = jax.random.normal(k_x, (B, input_dim, N), jnp.float32)

    fwd_bf16 = jax.jit(functools.partial(pointwise_mlp, compute_dtype=jnp.bfloat16))
    fwd_f32 = jax.jit(functools.partial(pointwise_mlp, compute_dtype=jnp.float32))

    out_bf16 = jax.block_until_ready(fwd_bf16(x, weights))
    out_f32 = jax.block_until_ready(fwd_f32(x, weights))
    assert out_bf16.shape == (B, output_dim, N), out_bf16.shape
    assert bool(jnp.all(jnp.isfinite(out_bf16)))

    ref_f32 = _reference(x, weights)
    ref_bf16 = _reference(x, weights, compute_dtype=jnp.bfloat16)
    # Exact-semantics check (f32 compute path vs f32 reference).
    assert jnp.allclose(out_f32, ref_f32, rtol=2e-3, atol=2e-3), \
        float(jnp.max(jnp.abs(out_f32 - ref_f32)))
    # bf16-MXU path vs matching bf16-input / f32-accumulate reference.
    assert jnp.allclose(out_bf16, ref_bf16, rtol=2e-3, atol=2e-3), \
        float(jnp.max(jnp.abs(out_bf16 - ref_bf16)))
    # Sanity: bf16 path stays close to true-f32 module semantics.
    assert jnp.allclose(out_bf16, ref_f32, rtol=1e-1, atol=1e-1), \
        float(jnp.max(jnp.abs(out_bf16 - ref_f32)))

    # Second (still small) shape exercising the lane-dense blocked path with a
    # partial trailing block: N=300 -> block_n=256, 2 point blocks.
    B2, N2 = 1, 300
    x2 = jax.random.normal(k_x2, (B2, input_dim, N2), jnp.float32)
    out2 = jax.block_until_ready(fwd_bf16(x2, weights))
    assert out2.shape == (B2, output_dim, N2), out2.shape
    assert bool(jnp.all(jnp.isfinite(out2)))
    ref2 = _reference(x2, weights, compute_dtype=jnp.bfloat16)
    assert jnp.allclose(out2, ref2, rtol=2e-3, atol=2e-3), \
        float(jnp.max(jnp.abs(out2 - ref2)))

    print("KERNEL_OK")
</pallas_src>

<mosaic_0001>
module attributes {stable_mosaic.version = 11 : i64} {
  func.func @kernel(%arg0: i32, %arg1: i32, %arg2: memref<1x6x16xf32, #tpu.memory_space<vmem>>, %arg3: memref<16x6xbf16, #tpu.memory_space<vmem>>, %arg4: memref<32x16xbf16, #tpu.memory_space<vmem>>, %arg5: memref<16x32xbf16, #tpu.memory_space<vmem>>, %arg6: memref<1x16x16xf32, #tpu.memory_space<vmem>>) attributes {dimension_semantics = [#tpu.dimension_semantics<parallel>, #tpu.dimension_semantics<parallel>], iteration_bounds = array<i64: 1, 2>, scalar_prefetch = 0 : i64, scratch_operands = 0 : i64, tpu.core_type = #tpu.core_type<tc>, window_params = [{transform_indices = @transform_0, window_bounds = array<i64: 1, 6, 16>}, {pipeline_mode = #tpu.pipeline_mode<synchronous>, transform_indices = @transform_1, window_bounds = array<i64: 16, 6>}, {pipeline_mode = #tpu.pipeline_mode<synchronous>, transform_indices = @transform_2, window_bounds = array<i64: 32, 16>}, {pipeline_mode = #tpu.pipeline_mode<synchronous>, transform_indices = @transform_3, window_bounds = array<i64: 16, 32>}, {transform_indices = @transform_4, window_bounds = array<i64: 1, 16, 16>}]} {
    %c0 = arith.constant 0 : index
    %c0_0 = arith.constant 0 : index
    %c0_1 = arith.constant 0 : index
    %0 = vector.load %arg2[%c0, %c0_0, %c0_1] : memref<1x6x16xf32, #tpu.memory_space<vmem>>, vector<1x6x16xf32>
    %1 = vector.shape_cast %0 : vector<1x6x16xf32> to vector<6x16xf32>
    %c0_2 = arith.constant 0 : index
    %c0_3 = arith.constant 0 : index
    %2 = vector.load %arg3[%c0_2, %c0_3] : memref<16x6xbf16, #tpu.memory_space<vmem>>, vector<16x6xbf16>
    %3 = arith.truncf %1 : vector<6x16xf32> to vector<6x16xbf16>
    %cst = arith.constant dense<0.000000e+00> : vector<16x16xf32>
    %4 = tpu.matmul %2, %3, %cst {dimension_numbers = #tpu.dot_dimension_numbers<[1], [0], [0], [1], [0, 0, 1, 1], [], []>} : vector<16x6xbf16>, vector<6x16xbf16>, vector<16x16xf32> -> vector<16x16xf32>
    %cst_4 = arith.constant 2.000000e-01 : f32
    %5 = vector.broadcast %cst_4 : f32 to vector<16x16xf32>
    %6 = arith.mulf %5, %4 : vector<16x16xf32>
    %7 = arith.maximumf %4, %6 : vector<16x16xf32>
    %c0_5 = arith.constant 0 : index
    %c0_6 = arith.constant 0 : index
    %8 = vector.load %arg4[%c0_5, %c0_6] : memref<32x16xbf16, #tpu.memory_space<vmem>>, vector<32x16xbf16>
    %9 = arith.truncf %7 : vector<16x16xf32> to vector<16x16xbf16>
    %cst_7 = arith.constant dense<0.000000e+00> : vector<32x16xf32>
    %10 = tpu.matmul %8, %9, %cst_7 {dimension_numbers = #tpu.dot_dimension_numbers<[1], [0], [0], [1], [0, 0, 1, 1], [], []>} : vector<32x16xbf16>, vector<16x16xbf16>, vector<32x16xf32> -> vector<32x16xf32>
    %cst_8 = arith.constant 2.000000e-01 : f32
    %11 = vector.broadcast %cst_8 : f32 to vector<32x16xf32>
    %12 = arith.mulf %11, %10 : vector<32x16xf32>
    %13 = arith.maximumf %10, %12 : vector<32x16xf32>
    %c0_9 = arith.constant 0 : index
    %c0_10 = arith.constant 0 : index
    %14 = vector.load %arg5[%c0_9, %c0_10] : memref<16x32xbf16, #tpu.memory_space<vmem>>, vector<16x32xbf16>
    %15 = arith.truncf %13 : vector<32x16xf32> to vector<32x16xbf16>
    %cst_11 = arith.constant dense<0.000000e+00> : vector<16x16xf32>
    %16 = tpu.matmul %14, %15, %cst_11 {dimension_numbers = #tpu.dot_dimension_numbers<[1], [0], [0], [1], [0, 0, 1, 1], [], []>} : vector<16x32xbf16>, vector<32x16xbf16>, vector<16x16xf32> -> vector<16x16xf32>
    %c0_12 = arith.constant 0 : index
    %c0_13 = arith.constant 0 : index
    %c0_14 = arith.constant 0 : index
    %17 = vector.load %arg6[%c0_12, %c0_13, %c0_14] : memref<1x16x16xf32, #tpu.memory_space<vmem>>, vector<1x16x16xf32>
    %18 = vector.shape_cast %17 : vector<1x16x16xf32> to vector<16x16xf32>
    %19 = vector.shape_cast %16 : vector<16x16xf32> to vector<1x16x16xf32>
    tpu.vector_store %arg6[%c0_12, %c0_13, %c0_14], %19 {strides = array<i32>} : memref<1x16x16xf32, #tpu.memory_space<vmem>>, vector<1x16x16xf32>,
    return
  }
  func.func @transform_0(%arg0: i32, %arg1: i32) -> (i32, i32, i32) {
    %c0_i32 = arith.constant 0 : i32
    %c0_i32_0 = arith.constant 0 : i32
    return %arg1, %c0_i32, %arg0 : i32, i32, i32
  }
  func.func @transform_1(%arg0: i32, %arg1: i32) -> (i32, i32) {
    %c0_i32 = arith.constant 0 : i32
    %c0_i32_0 = arith.constant 0 : i32
    %c0_i32_1 = arith.constant 0 : i32
    return %c0_i32, %c0_i32_0 : i32, i32
  }
  func.func @transform_2(%arg0: i32, %arg1: i32) -> (i32, i32) {
    %c0_i32 = arith.constant 0 : i32
    %c0_i32_0 = arith.constant 0 : i32
    %c0_i32_1 = arith.constant 0 : i32
    return %c0_i32, %c0_i32_0 : i32, i32
  }
  func.func @transform_3(%arg0: i32, %arg1: i32) -> (i32, i32) {
    %c0_i32 = arith.constant 0 : i32
    %c0_i32_0 = arith.constant 0 : i32
    %c0_i32_1 = arith.constant 0 : i32
    return %c0_i32, %c0_i32_0 : i32, i32
  }
  func.func @transform_4(%arg0: i32, %arg1: i32) -> (i32, i32, i32) {
    %c0_i32 = arith.constant 0 : i32
    %c0_i32_0 = arith.constant 0 : i32
    return %arg1, %c0_i32, %arg0 : i32, i32, i32
  }
}

</mosaic_0001>

<llo_original>
// kernel: pointwise_mlp.1
$region0: #{pointwise_mlp.1}
  #allocation0 [shape = 'u32[]', space=smem, size = 0x4, offset = 0x4, fixed_abs, tag = 'smem constant byte address 0x4 - core index']
  #allocation1 [shape = 'u32[72,128]{1,0:T(1,128)}', space=vmem, size = 0x9000, scoped, tag = 'internal scratch']
  %s0 = inlined_call_operand.vmem [shape: f32[2,6,16], index: 0, kind: input, shape index: {}]
  %s1 = inlined_call_operand.vmem [shape: bf16[16,6], index: 1, kind: input, shape index: {}]
  %s2 = inlined_call_operand.vmem [shape: bf16[32,16], index: 2, kind: input, shape index: {}]
  %s3 = inlined_call_operand.vmem [shape: bf16[16,32], index: 3, kind: input, shape index: {}]
  %s4 = inlined_call_operand.hbm [shape: f32[2,16,16], index: 4, kind: output, shape index: {}]
  %s5 = sld [smem:[#allocation0]]
  $region49: #{pointwise_mlp.1} parent=0
    _
  %s7 = ssub.s32 1, %s5
  %s8 = scalar_select 0, %s7, %s5
  $region1: #{pointwise_mlp.1} parent=0
    #allocation2 [shape = 'u8[16384]{0}', space=vmem, size = 0x4000, scoped, tag = 'output window, operand 0']
    #allocation3 [shape = 's32[2]{0}', space=sflag, size = 0x8, scoped, tag = 'scoped memory for pointwise_mlp.1']
    %9 = vsyncpa [#allocation3], 0
    %s10 = scalar_lea.sflag [#allocation3], 1
    %11 = vsyncpa %s10, 0
    loop: start=0, step=1, limit=4
    $region2: #{pointwise_mlp.1} parent=1 // loop_pre_header
      _
    $region3: #{pointwise_mlp.1} parent=1 // loop_header
      %s13 = sphi 0, %s17
      %p14 = scmp.ge.s32.totalorder %s13, 4
      %s20 = sphi 0, %s32
      %s21 = sphi 0, %s28
      %s22 = sphi 0, %s20
      %s23 = sphi 0, %s21
      %s24 = sphi 0, %s22
      %s25 = sphi 0, %s23
      %s37 = sphi 0, %s39
      %s40 = sphi 0, %s37
      %s41 = sphi 0, %s40
      %s57 = sphi 0, %s41
      %s61 = sphi 0, %s61
      %s63 = sphi 0, %s61
      %s64 = sphi 0, %s63
      %s78 = sphi 0, %s64
      %s82 = sphi 0, %s82
      %s84 = sphi 0, %s82
      %s85 = sphi 0, %s84
      %s99 = sphi 0, %s85
      %s103 = sphi 0, %s103
      %s105 = sphi 0, %s103
      %s106 = sphi 0, %s105
      %s120 = sphi 0, %s106
      %s128 = sphi 0, %s130
      %s131 = sphi 0, %s128
      %s132 = sphi 0, %s131
      %s148 = sphi 0, %s132
    $region4: #{pointwise_mlp.1} parent=1 // loop_header_branch
      %16 = sbr.rel (%p14) target = $region8
    $region5: #{pointwise_mlp.1} parent=1 // loop_body
      %s18 = ssub.s32 %s13, 1
      %s19 = ssub.s32 %s13, 2
      %s26 = sadd.s32 1, %s21
      %p27 = scmp.ge.s32.totalorder %s26, 2
      %s28 = scalar_select %p27, 0, %s26
      %s29 = sadd.s32 1, %s20
      %s30 = scalar_select %p27, %s29, %s20
      %p31 = scmp.ge.s32.totalorder %s30, 1
      %s32 = scalar_select %p31, 0, %s30
      %s33 = ssub.s32 %s21, %s28
      %s34 = ssub.s32 %s20, %s32
      %s35 = sor.u32 %s33, %s34
      %p36 = scmp.eq.s32.totalorder %s35, 0
      %s38 = sadd.s32 %s37, 1
      %s39 = scalar_select %p36, %s37, %s38
      %p42 = pneg %p36
      %p43 = scmp.eq.s32.totalorder %s13, 1
      %p44 = por %p42, %p43
      %p45 = scmp.ne.s32.totalorder %s37, %s40
      %p46 = scmp.eq.s32.totalorder %s13, 0
      %p47 = por %p45, %p46
      %p48 = scmp.ne.s32.totalorder %s37, %s40
      %p49 = scmp.eq.s32.totalorder %s18, 1
      %p50 = por %p48, %p49
      %p51 = scmp.ne.s32.totalorder %s40, %s41
      %p52 = scmp.eq.s32.totalorder %s18, 0
      %p53 = por %p51, %p52
      %p54 = scmp.ne.s32.totalorder %s40, %s41
      %p55 = scmp.eq.s32.totalorder %s19, 1
      %p56 = por %p54, %p55
      %p58 = scmp.ne.s32.totalorder %s41, %s57
      %p59 = scmp.eq.s32.totalorder %s19, 0
      %p60 = por %p58, %p59
      %s62 = sadd.s32 %s61, 1
      %p65 = scmp.eq.s32.totalorder %s13, 1
      %p66 = scmp.ne.s32.totalorder %s61, %s63
      %p67 = scmp.eq.s32.totalorder %s13, 0
      %p68 = por %p66, %p67
      %p69 = scmp.ne.s32.totalorder %s61, %s63
      %p70 = scmp.eq.s32.totalorder %s18, 1
      %p71 = por %p69, %p70
      %p72 = scmp.ne.s32.totalorder %s63, %s64
      %p73 = scmp.eq.s32.totalorder %s18, 0
      %p74 = por %p72, %p73
      %p75 = scmp.ne.s32.totalorder %s63, %s64
      %p76 = scmp.eq.s32.totalorder %s19, 1
      %p77 = por %p75, %p76
      %p79 = scmp.ne.s32.totalorder %s64, %s78
      %p80 = scmp.eq.s32.totalorder %s19, 0
      %p81 = por %p79, %p80
      %s83 = sadd.s32 %s82, 1
      %p86 = scmp.eq.s32.totalorder %s13, 1
      %p87 = scmp.ne.s32.totalorder %s82, %s84
      %p88 = scmp.eq.s32.totalorder %s13, 0
      %p89 = por %p87, %p88
      %p90 = scmp.ne.s32.totalorder %s82, %s84
      %p91 = scmp.eq.s32.totalorder %s18, 1
      %p92 = por %p90, %p91
      %p93 = scmp.ne.s32.totalorder %s84, %s85
      %p94 = scmp.eq.s32.totalorder %s18, 0
      %p95 = por %p93, %p94
      %p96 = scmp.ne.s32.totalorder %s84, %s85
      %p97 = scmp.eq.s32.totalorder %s19, 1
      %p98 = por %p96, %p97
      %p100 = scmp.ne.s32.totalorder %s85, %s99
      %p101 = scmp.eq.s32.totalorder %s19, 0
      %p102 = por %p100, %p101
      %s104 = sadd.s32 %s103, 1
      %p107 = scmp.eq.s32.totalorder %s13, 1
      %p108 = scmp.ne.s32.totalorder %s103, %s105
      %p109 = scmp.eq.s32.totalorder %s13, 0
      %p110 = por %p108, %p109
      %p111 = scmp.ne.s32.totalorder %s103, %s105
      %p112 = scmp.eq.s32.totalorder %s18, 1
      %p113 = por %p111, %p112
      %p114 = scmp.ne.s32.totalorder %s105, %s106
      %p115 = scmp.eq.s32.totalorder %s18, 0
      %p116 = por %p114, %p115
      %p117 = scmp.ne.s32.totalorder %s105, %s106
      %p118 = scmp.eq.s32.totalorder %s19, 1
      %p119 = por %p117, %p118
      %p121 = scmp.ne.s32.totalorder %s106, %s120
      %p122 = scmp.eq.s32.totalorder %s19, 0
      %p123 = por %p121, %p122
      %s124 = ssub.s32 %s21, %s28
      %s125 = ssub.s32 %s20, %s32
      %s126 = sor.u32 %s124, %s125
      %p127 = scmp.eq.s32.totalorder %s126, 0
      %s129 = sadd.s32 %s128, 1
      %s130 = scalar_select %p127, %s128, %s129
      %p133 = pneg %p127
      %p134 = scmp.eq.s32.totalorder %s13, 1
      %p135 = por %p133, %p134
      %p136 = scmp.ne.s32.totalorder %s128, %s131
      %p137 = scmp.eq.s32.totalorder %s13, 0
      %p138 = por %p136, %p137
      %p139 = scmp.ne.s32.totalorder %s128, %s131
      %p140 = scmp.eq.s32.totalorder %s18, 1
      %p141 = por %p139, %p140
      %p142 = scmp.ne.s32.totalorder %s131, %s132
      %p143 = scmp.eq.s32.totalorder %s18, 0
      %p144 = por %p142, %p143
      %p145 = scmp.ne.s32.totalorder %s131, %s132
      %p146 = scmp.eq.s32.totalorder %s19, 1
      %p147 = por %p145, %p146
      %p149 = scmp.ne.s32.totalorder %s132, %s148
      %p150 = scmp.eq.s32.totalorder %s19, 0
      %p151 = por %p149, %p150
      %p152 = scmp.le.s32.totalorder 1, %s13
      %p153 = scmp.lt.s32.totalorder %s13, 3
      %p154 = pnand %p152, %p153
      %p155 = pneg %p154
      // Predicated region
      $region9: #{pointwise_mlp.1} parent=5 // pred_check
        _
      $region10: #{pointwise_mlp.1} parent=5 // pred_check_branch
        %157 = sbr.rel (%p154) target = $region12
      $region11: #{pointwise_mlp.1} parent=5 // pred_region
        %s158 = ssub.s32 %s13, 1
        // Predicated region
        $region13: #{pointwise_mlp.1} parent=11 // pred_check
          %p159 = pneg %p74
        $region14: #{pointwise_mlp.1} parent=11 // pred_check_branch
          %161 = sbr.rel (%p159) target = $region16
        $region15: #{pointwise_mlp.1} parent=11 // pred_region
          _
        $region16: #{pointwise_mlp.1} parent=11 // pred_fallthru
          _
        // Predicated region
        $region17: #{pointwise_mlp.1} parent=11 // pred_check
          %p162 = pneg %p95
        $region18: #{pointwise_mlp.1} parent=11 // pred_check_branch
          %164 = sbr.rel (%p162) target = $region20
        $region19: #{pointwise_mlp.1} parent=11 // pred_region
          _
        $region20: #{pointwise_mlp.1} parent=11 // pred_fallthru
          _
        // Predicated region
        $region21: #{pointwise_mlp.1} parent=11 // pred_check
          %p165 = pneg %p116
        $region22: #{pointwise_mlp.1} parent=11 // pred_check_branch
          %167 = sbr.rel (%p165) target = $region24
        $region23: #{pointwise_mlp.1} parent=11 // pred_region
          _
        $region24: #{pointwise_mlp.1} parent=11 // pred_fallthru
          _
      $region12: #{pointwise_mlp.1} parent=5 // pred_fallthru
        _
      %p168 = scmp.lt.s32.totalorder %s13, 2
      // Predicated region
      $region25: #{pointwise_mlp.1} parent=5 // pred_check
        %p169 = pneg %p168
      $region26: #{pointwise_mlp.1} parent=5 // pred_check_branch
        %171 = sbr.rel (%p169) target = $region28
      $region27: #{pointwise_mlp.1} parent=5 // pred_region
        // Predicated region
        $region29: #{pointwise_mlp.1} parent=27 // pred_check
          %p172 = pneg %p47
        $region30: #{pointwise_mlp.1} parent=27 // pred_check_branch
          %174 = sbr.rel (%p172) target = $region32
        $region31: #{pointwise_mlp.1} parent=27 // pred_region
          %p175 = scmp.lt.s32.totalorder %s21, 1
          %s176 = scalar_select %p175, %s21, 1
          %p177 = scmp.lt.s32.totalorder %s20, 0
          %s178 = scalar_select %p177, %s20, 0
          %s179 = sadd.s32 %s178, %s176
          %s180 = smul.addr %s179, 8
          %s181 = scalar_lea.vmem %s0, %s180
        $region32: #{pointwise_mlp.1} parent=27 // pred_fallthru
          _
      $region28: #{pointwise_mlp.1} parent=5 // pred_fallthru
        _
      %p182 = scmp.le.s32.totalorder 1, %s13
      %p183 = scmp.lt.s32.totalorder %s13, 3
      %p184 = pnand %p182, %p183
      %p185 = pneg %p184
      // Predicated region
      $region33: #{pointwise_mlp.1} parent=5 // pred_check
        _
      $region34: #{pointwise_mlp.1} parent=5 // pred_check_branch
        %187 = sbr.rel (%p184) target = $region36
      $region35: #{pointwise_mlp.1} parent=5 // pred_region
        %s188 = ssub.s32 %s13, 1
        %p189 = scmp.lt.s32.totalorder %s23, 1
        %s190 = scalar_select %p189, %s23, 1
        %p191 = scmp.lt.s32.totalorder %s22, 0
        %s192 = scalar_select %p191, %s22, 0
        %s193 = sadd.s32 %s192, %s190
        %s194 = smul.addr %s193, 8
        %s195 = scalar_lea.vmem %s0, %s194
        %p196 = pneg %p53
        %p197 = pneg %p50
        %p198 = pneg %p74
        %p199 = pneg %p71
        %p200 = pneg %p95
        %p201 = pneg %p92
        %p202 = pneg %p116
        %p203 = pneg %p113
        %p204 = pneg %p144
        %p205 = pneg %p141
        %s206 = sand.u32 %s131, 1
        %s207 = scalar_lea.sflag [#allocation3], %s206
        %s208 = sand.u32 %s131, 1
        %s209 = smul.addr %s208, 16
        %s210 = scalar_lea.vmem [#allocation2], %s209
        %p211 = scmp.lt.s32.totalorder %s23, 1
        %s212 = scalar_select %p211, %s23, 1
        %p213 = scmp.lt.s32.totalorder %s22, 0
        %s214 = scalar_select %p213, %s22, 0
        %s215 = sadd.s32 %s214, %s212
        %s216 = smul.addr %s215, 8
        %s217 = scalar_lea.vmem %s0, %s216
        %v219 = vld [vmem:[%s217] sm:$0x3f]
        %v220 = vld [vmem:[%s1] sm:$0xf]
        %v221 = vld [vmem:[%s1 + $0x4] sm:$0xf]
        %v222 = vpack.c.bf16 %v219, %v219
        %v225 = vunpack.c.l.b16 %v220
        %v226 = vunpack.c.l.b16 %v221
        %v227 = vpack.c.b16 %v226, %v225
        %vm228 = vcmask 48128
        %v230 = vsel %vm228, %v227, 0
        %vm232 = vcmask 1042432
        %v234 = vsel %vm232, %v222, 0
        %236 = vmatpush.bf16.msra.mxu0 0
        %237 = vmatpush.bf16.msra.mxu0 0
        %238 = vmatpush.bf16.msra.mxu0 0
        %239 = vmatpush.bf16.msra.mxu0 0
        %240 = vmatpush.bf16.msra.mxu0 0
        %241 = vmatpush.bf16.msra.mxu0 0
        %242 = vmatpush.bf16.msra.mxu0 0
        %243 = vmatpush.bf16.msra.mxu0 %v234
        %244 = vmatmul.bf16.gmra.mxu0 %v230
        %v245 = vpop.f32.mrf.mxu0
        %v246 = vadd.f32 0.0, %v245
        %v247 = vpop.f32.mrf.mxu0
        %v248 = vadd.f32 0.0, %v247
        %249 = vdwg.mxu0
        %v250 = vmul.f32 %v246, 0.2
        %v251 = vmul.f32 %v248, 0.2
        %v252 = vmax.f32 %v246, %v250
        %v253 = vmax.f32 %v248, %v251
        %v254 = vld [vmem:[%s2] sm:$0xf]
        %v255 = vld [vmem:[%s2 + $0x4] sm:$0xf]
        %v256 = vld [vmem:[%s2 + $0x8] sm:$0xf]
        %v257 = vld [vmem:[%s2 + $0xc] sm:$0xf]
        %v258 = vpack.c.bf16 %v253, %v252
        %v263 = vunpack.c.l.b16 %v254
        %v264 = vunpack.c.l.b16 %v255
        %v265 = vunpack.c.l.b16 %v256
        %v266 = vunpack.c.l.b16 %v257
        %v267 = vpack.c.b16 %v264, %v263
        %v268 = vpack.c.b16 %v266, %v265
        %vm269 = vcmask 130048
        %v271 = vsel %vm269, %v267, 0
        %v274 = vsel %vm269, %v268, 0
        %276 = vmatpush.bf16.msra.mxu0 0
        %277 = vmatpush.bf16.msra.mxu0 0
        %278 = vmatpush.bf16.msra.mxu0 0
        %279 = vmatpush.bf16.msra.mxu0 0
        %280 = vmatpush.bf16.msra.mxu0 0
        %281 = vmatpush.bf16.msra.mxu0 0
        %282 = vmatpush.bf16.msra.mxu0 0
        %283 = vmatpush.bf16.msra.mxu0 %v258
        %284 = vmatmul.bf16.gmra.mxu0 %v271
        %v285 = vpop.f32.mrf.mxu0
        %v286 = vadd.f32 0.0, %v285
        %v287 = vpop.f32.mrf.mxu0
        %v288 = vadd.f32 0.0, %v287
        %289 = vmatmul.bf16.gmra.mxu0 %v274
        %v290 = vpop.f32.mrf.mxu0
        %v291 = vadd.f32 0.0, %v290
        %v292 = vpop.f32.mrf.mxu0
        %v293 = vadd.f32 0.0, %v292
        %294 = vdwg.mxu0
        %v295 = vmul.f32 %v286, 0.2
        %v296 = vmul.f32 %v288, 0.2
        %v297 = vmul.f32 %v291, 0.2
        %v298 = vmul.f32 %v293, 0.2
        %v299 = vmax.f32 %v286, %v295
        %v300 = vmax.f32 %v288, %v296
        %v301 = vmax.f32 %v291, %v297
        %v302 = vmax.f32 %v293, %v298
        %v303 = vld [vmem:[%s3] sm:$0xf]
        %v304 = vld [vmem:[%s3 + $0x4] sm:$0xf]
        %v305 = vpack.c.bf16 %v300, %v299
        %v306 = vpack.c.bf16 %v302, %v301
        %v309 = vunpack.c.l.b16 %v303
        %v310 = vunpack.c.l.b16 %v304
        %v311 = vpack.c.b16 %v310, %v309
        %vm312 = vcmask 261120
        %v314 = vsel %vm312, %v311, 0
        %316 = vmatpush.bf16.msra.mxu0 0
        %317 = vmatpush.bf16.msra.mxu0 0
        %318 = vmatpush.bf16.msra.mxu0 0
        %319 = vmatpush.bf16.msra.mxu0 0
        %320 = vmatpush.bf16.msra.mxu0 0
        %321 = vmatpush.bf16.msra.mxu0 0
        %322 = vmatpush.bf16.msra.mxu0 %v306
        %323 = vmatpush.bf16.msra.mxu0 %v305
        %324 = vmatmul.bf16.gmra.mxu0 %v314
        %v325 = vpop.f32.mrf.mxu0
        %v326 = vadd.f32 0.0, %v325
        %v327 = vpop.f32.mrf.mxu0
        %v328 = vadd.f32 0.0, %v327
        %329 = vdwg.mxu0
        %330 = vst.msk [vmem:[%s210] sm:$0xff] %vm269, %v326
        %331 = vst.msk [vmem:[%s210 + $0x8] sm:$0xff] %vm269, %v328
        %s332 = sand.u32 %s131, 1
        %s333 = scalar_lea.sflag [#allocation3], %s332
        %s334 = sand.u32 %s131, 1
        %s335 = smul.addr %s334, 16
        %s336 = scalar_lea.vmem [#allocation2], %s335
        // Predicated region
        $region37: #{pointwise_mlp.1} parent=35 // pred_check
          %p337 = pneg %p141
        $region38: #{pointwise_mlp.1} parent=35 // pred_check_branch
          %339 = sbr.rel (%p337) target = $region40
        $region39: #{pointwise_mlp.1} parent=35 // pred_region
          %341 = vsyncadd %s333, 0
          %s342 = smul.addr %s23, 2
          %s343 = sadd.s32 %s22, %s342
          %s344 = smul.addr %s343, 8
          %s345 = scalar_lea.hbm %s4, %s344
          %s346 = sshll.u32 %s336, 4
          %s347 = int_to_ptr.vmem [resolvable:$true] %s346
          %s348 = sshll.u32 %s345, 4
          %s349 = int_to_ptr.hbm [resolvable:$true] %s348
          %354 = dma.vmem_to_hbm [thread:$0]  %s347, 256, %s349, %s333, 128, 128, 8
        $region40: #{pointwise_mlp.1} parent=35 // pred_fallthru
          _
      $region36: #{pointwise_mlp.1} parent=5 // pred_fallthru
        _
      %p355 = scmp.le.s32.totalorder 2, %s13
      // Predicated region
      $region41: #{pointwise_mlp.1} parent=5 // pred_check
        %p356 = pneg %p355
      $region42: #{pointwise_mlp.1} parent=5 // pred_check_branch
        %358 = sbr.rel (%p356) target = $region44
      $region43: #{pointwise_mlp.1} parent=5 // pred_region
        %s359 = ssub.s32 %s13, 2
        // Predicated region
        $region45: #{pointwise_mlp.1} parent=43 // pred_check
          %p360 = pneg %p147
        $region46: #{pointwise_mlp.1} parent=43 // pred_check_branch
          %362 = sbr.rel (%p360) target = $region48
        $region47: #{pointwise_mlp.1} parent=43 // pred_region
          %s363 = sand.u32 %s132, 1
          %s364 = scalar_lea.sflag [#allocation3], %s363
          %s365 = sand.u32 %s132, 1
          %s366 = smul.addr %s365, 16
          %s367 = scalar_lea.vmem [#allocation2], %s366
          %369 = dma.done %s364, 256
        $region48: #{pointwise_mlp.1} parent=43 // pred_fallthru
          _
      $region44: #{pointwise_mlp.1} parent=5 // pred_fallthru
        _
    $region6: #{pointwise_mlp.1} parent=1 // loop_footer
      %s17 = sadd.s32 1, %s13
    $region7: #{pointwise_mlp.1} parent=1 // loop_footer_branch
      %12 = sbr.rel target = $region3
    $region8: #{pointwise_mlp.1} parent=1 // loop_exit
      _
    %370 = vsyncpa [#allocation3], 1
    %s371 = scalar_lea.sflag [#allocation3], 1
    %372 = vsyncpa %s371, 1

</llo_original>
